<compile_context>
chip_gen: v5e
topology: v5e:2x2
jax: 0.10.0
libtpu: 0.0.40
codegen_flags: <defaults>
</compile_context>

<pallas_src>
import jax
import jax.numpy as jnp
from jax.experimental import pallas as pl
from jax.experimental.pallas import tpu as pltpu


# --------------------------------------------------------------------------
# Fused kernel: reflect-pad 3x3/stride-2 conv (as one K=9C matmul) +
# folded-BN bias + LeakyReLU, on one (batch, row-tile) block.
# --------------------------------------------------------------------------
def downsample_kernel(x_ref, halo_ref, w_ref, b_ref, o_ref, slab_ref):
    # x_ref:    (1, TH, Wo, 4C) bf16  -- s2d rows of this tile, planes [ee,eo,oo,oe]
    # halo_ref: (1, 1,  Wo, 4C) bf16  -- s2d row (t*TH - 1), clamped to 0 (reflect)
    # w_ref:    (9C, O) bf16          -- tap-packed conv weights, BN scale folded in
    # b_ref:    (1, O)  f32           -- folded BatchNorm bias
    # o_ref:    (1, TH, Wo, O) bf16   -- output tile
    # slab_ref: (TH, Wo, 9C) bf16     -- scratch: merged-K matmul operand
    _, th, wo, c4 = x_ref.shape
    c = c4 // 4
    o_ch = o_ref.shape[3]
    m = th * wo

    x = x_ref[0]          # (TH, Wo, 4C)
    halo = halo_ref[0]    # (1,  Wo, 4C)

    # ---- assemble the K = 9C operand with plain ref stores (no concats) ----
    # lanes [0:4C]  taps (1,1),(1,2),(2,2),(2,1): planes [ee,eo,oo,oe] at (i, j)
    slab_ref[:, :, 0:4 * c] = x

    # lanes [4C:6C] taps (0,2),(0,1): planes [oo,oe] at (i-1, j); halo row for i==0
    slab_ref[0:1, :, 4 * c:6 * c] = halo[:, :, 2 * c:4 * c]
    if th > 1:
        slab_ref[1:th, :, 4 * c:6 * c] = x[0:th - 1, :, 2 * c:4 * c]

    # lanes [6C:8C] taps (1,0),(2,0): planes [eo,oo] at (i, j-1); reflect == edge clamp
    slab_ref[:, 0:1, 6 * c:8 * c] = x[:, 0:1, c:3 * c]
    if wo > 1:
        slab_ref[:, 1:wo, 6 * c:8 * c] = x[:, 0:wo - 1, c:3 * c]

    # lanes [8C:9C] tap (0,0): plane [oo] at (i-1, j-1); both shifts edge-clamped
    slab_ref[0:1, 0:1, 8 * c:9 * c] = halo[:, 0:1, 2 * c:3 * c]
    if wo > 1:
        slab_ref[0:1, 1:wo, 8 * c:9 * c] = halo[:, 0:wo - 1, 2 * c:3 * c]
    if th > 1:
        slab_ref[1:th, 0:1, 8 * c:9 * c] = x[0:th - 1, 0:1, 2 * c:3 * c]
        if wo > 1:
            slab_ref[1:th, 1:wo, 8 * c:9 * c] = x[0:th - 1, 0:wo - 1, 2 * c:3 * c]

    # ---- single wide-K MXU matmul, f32 accumulation ----
    acc = jnp.dot(slab_ref[...].reshape(m, 9 * c), w_ref[...],
                  preferred_element_type=jnp.float32)

    # ---- folded BatchNorm bias + LeakyReLU(0.01) (BN scale lives in w_ref) ----
    y = acc + b_ref[...]
    y = jnp.maximum(y, 0.01 * y)
    o_ref[0] = y.reshape(th, wo, o_ch).astype(o_ref.dtype)


# --------------------------------------------------------------------------
# Tiling helpers
# --------------------------------------------------------------------------
def _vmem_capacity_bytes():
    try:
        return int(pltpu.get_tpu_info().vmem_capacity_bytes)
    except Exception:
        return 64 * 1024 * 1024            # v7x per-TensorCore floor (safe default)


def _tile_vmem_bytes(th, wo, c, o):
    bf16 = 2
    in_blk = th * wo * 4 * c * bf16        # x tile
    halo = wo * 4 * c * bf16               # halo row
    w = 9 * c * o * bf16                   # packed weights
    b = o * 4                              # bias (f32)
    out_blk = th * wo * o * bf16           # output tile
    slab = th * wo * 9 * c * bf16          # scratch operand (single-buffered)
    acc = th * wo * o * 4                  # f32 matmul result values
    # pipeline double-buffers the DMA'd blocks
    return 2 * (in_blk + halo + w + b + out_blk) + slab + acc


def _pick_row_tile(ho, wo, c, o, requested, budget_bytes, n_batch):
    divisors = [d for d in range(1, ho + 1) if ho % d == 0]
    if requested is not None:
        capped = [d for d in divisors if d <= max(int(requested), 1)]
        divisors = capped or [1]
    fitting = [d for d in divisors if _tile_vmem_bytes(d, wo, c, o) <= budget_bytes]
    if not fitting:
        fitting = [min(divisors)]          # smallest available tile
    th = max(fitting)
    # v7x has 2 TensorCores per chip: make sure there are >= 2 parallel grid
    # steps, and prefer an even number of row tiles when the batch is 1.
    t = ho // th
    if n_batch * t < 2 or (n_batch == 1 and t % 2 != 0):
        pref = [d for d in fitting
                if n_batch * (ho // d) >= 2 and (n_batch > 1 or (ho // d) % 2 == 0)]
        if pref:
            th = max(pref)
    return th


# --------------------------------------------------------------------------
# Wrapper: NCHW in, NCHW out by default (matches the PyTorch module).
# --------------------------------------------------------------------------
def downsample_forward(x_nchw, params, *, row_tile=None, out_dtype=jnp.bfloat16,
                       output_layout="NCHW"):
    w, gamma, beta, run_mean, run_var = params
    n, c, h, w_sp = x_nchw.shape
    assert h % 2 == 0 and w_sp % 2 == 0, "DownSample expects even spatial dims"
    o = w.shape[0]
    ho, wo = h // 2, w_sp // 2

    # ---- space-to-depth + NCHW->NHWC relayout, done in bf16 so the XLA
    #      transpose pass moves half the bytes.  Plane order: [ee, eo, oo, oe].
    xb = x_nchw.astype(jnp.bfloat16)
    x6 = xb.reshape(n, c, ho, 2, wo, 2)
    planes = jnp.stack(
        [x6[:, :, :, 0, :, 0],    # ee
         x6[:, :, :, 0, :, 1],    # eo
         x6[:, :, :, 1, :, 1],    # oo
         x6[:, :, :, 1, :, 0]],   # oe
        axis=2)                                            # (N, C, 4, Ho, Wo)
    x_s2d = jnp.transpose(planes, (0, 3, 4, 2, 1)).reshape(n, ho, wo, 4 * c)

    # ---- fold BatchNorm (eval) into the weights (f32) and a bias vector
    eps = 1e-5
    inv_std = 1.0 / jnp.sqrt(run_var.astype(jnp.float32) + eps)
    scale = gamma.astype(jnp.float32) * inv_std                      # (O,)
    bias = (beta.astype(jnp.float32)
            - run_mean.astype(jnp.float32) * scale).reshape(1, o)    # (1, O) f32

    # ---- weights: OIHW -> HWIO, packed to a single (9C, O) slab matching the
    #      in-kernel operand layout; scale folded in f32, then cast to bf16.
    w_hwio = jnp.transpose(w, (2, 3, 1, 0)).astype(jnp.float32)      # (3, 3, I, O)
    w_packed = jnp.concatenate(
        [w_hwio[1, 1], w_hwio[1, 2], w_hwio[2, 2], w_hwio[2, 1],     # (i,   j)
         w_hwio[0, 2], w_hwio[0, 1],                                 # (i-1, j)
         w_hwio[1, 0], w_hwio[2, 0],                                 # (i,   j-1)
         w_hwio[0, 0]],                                              # (i-1, j-1)
        axis=0)                                                      # (9C, O)
    w_packed = (w_packed * scale[None, :]).astype(jnp.bfloat16)

    # ---- row tiling: largest divisor of Ho that fits a VMEM budget
    phys_vmem = _vmem_capacity_bytes()
    th = _pick_row_tile(ho, wo, c, o, row_tile, int(phys_vmem * 0.4), n)
    t = ho // th

    need = _tile_vmem_bytes(th, wo, c, o)
    vmem_limit = int(min(phys_vmem - 8 * 1024 * 1024,
                         max(32 * 1024 * 1024, 2 * need)))

    y_nhwc = pl.pallas_call(
        downsample_kernel,
        out_shape=jax.ShapeDtypeStruct((n, ho, wo, o), out_dtype),
        grid_spec=pltpu.PrefetchScalarGridSpec(
            num_scalar_prefetch=0,
            grid=(n, t),
            in_specs=[
                # main s2d tile
                pl.BlockSpec((1, th, wo, 4 * c), lambda b, r: (b, r, 0, 0)),
                # 1-row look-behind halo: same HBM array, clamped index_map
                # (row r*th - 1; reflect padding makes row 0 its own halo)
                pl.BlockSpec((1, 1, wo, 4 * c),
                             lambda b, r: (b, jnp.maximum(r * th - 1, 0), 0, 0)),
                # grid-invariant packed weights / bias
                pl.BlockSpec((9 * c, o), lambda b, r: (0, 0)),
                pl.BlockSpec((1, o), lambda b, r: (0, 0)),
            ],
            out_specs=pl.BlockSpec((1, th, wo, o), lambda b, r: (b, r, 0, 0)),
            scratch_shapes=[pltpu.VMEM((th, wo, 9 * c), jnp.bfloat16)],
        ),
        compiler_params=pltpu.CompilerParams(
            dimension_semantics=("parallel", "parallel"),
            vmem_limit_bytes=vmem_limit,
        ),
    )(x_s2d, x_s2d, w_packed, bias)

    if output_layout == "NHWC":
        return y_nhwc                       # skip the layout pass if downstream is NHWC
    return jnp.transpose(y_nhwc, (0, 3, 1, 2))   # NCHW, matches the nn.Module


# --------------------------------------------------------------------------
# Pure-JAX reference (f32) for the correctness check.
# --------------------------------------------------------------------------
def reference_forward(x, params):
    w, gamma, beta, run_mean, run_var = params
    xp = jnp.pad(x, ((0, 0), (0, 0), (1, 1), (1, 1)), mode="reflect")
    y = jax.lax.conv_general_dilated(
        xp, w, window_strides=(2, 2), padding="VALID",
        dimension_numbers=("NCHW", "OIHW", "NCHW"))
    eps = 1e-5
    y = (y - run_mean[None, :, None, None]) / jnp.sqrt(run_var + eps)[None, :, None, None]
    y = y * gamma[None, :, None, None] + beta[None, :, None, None]
    return jnp.where(y >= 0.0, y, 0.01 * y)


if __name__ == "__main__":
    n, c, h, w_sp = 2, 16, 16, 16
    key = jax.random.PRNGKey(0)
    kx, kw, kg, kb, km, kv = jax.random.split(key, 6)
    x = jax.random.normal(kx, (n, c, h, w_sp), jnp.float32)
    w = jax.random.normal(kw, (c, c, 3, 3), jnp.float32) * 0.1
    gamma = 1.0 + 0.1 * jax.random.normal(kg, (c,), jnp.float32)
    beta = 0.1 * jax.random.normal(kb, (c,), jnp.float32)
    run_mean = 0.1 * jax.random.normal(km, (c,), jnp.float32)
    run_var = jax.random.uniform(kv, (c,), jnp.float32, minval=0.5, maxval=1.5)
    params = (w, gamma, beta, run_mean, run_var)

    ref = reference_forward(x, params)

    # explicit row_tile=4 exercises the multi-tile path (interior halo row)
    out = downsample_forward(x, params, row_tile=4)
    out = jax.block_until_ready(out)
    assert out.shape == (n, c, h // 2, w_sp // 2), out.shape
    err = float(jnp.max(jnp.abs(out.astype(jnp.float32) - ref)))
    assert err < 0.1, f"max abs error vs reference (row_tile=4): {err}"

    # default auto-tiling path
    out_auto = jax.block_until_ready(downsample_forward(x, params))
    err_auto = float(jnp.max(jnp.abs(out_auto.astype(jnp.float32) - ref)))
    assert err_auto < 0.1, f"max abs error vs reference (auto tile): {err_auto}"

    print("KERNEL_OK")
</pallas_src>

<mosaic_0001>
module attributes {stable_mosaic.version = 11 : i64} {
  func.func @downsample_kernel(%arg0: i32, %arg1: i32, %arg2: memref<1x4x8x64xbf16, #tpu.memory_space<vmem>>, %arg3: memref<1x1x8x64xbf16, #tpu.memory_space<vmem>>, %arg4: memref<144x16xbf16, #tpu.memory_space<vmem>>, %arg5: memref<1x16xf32, #tpu.memory_space<vmem>>, %arg6: memref<1x4x8x16xbf16, #tpu.memory_space<vmem>>, %arg7: memref<4x8x144xbf16, #tpu.memory_space<vmem>>) attributes {dimension_semantics = [#tpu.dimension_semantics<parallel>, #tpu.dimension_semantics<parallel>], iteration_bounds = array<i64: 2, 2>, scalar_prefetch = 0 : i64, scratch_operands = 1 : i64, tpu.core_type = #tpu.core_type<tc>, window_params = [{transform_indices = @transform_0, window_bounds = array<i64: 1, 4, 8, 64>}, {transform_indices = @transform_1, window_bounds = array<i64: 1, 1, 8, 64>}, {pipeline_mode = #tpu.pipeline_mode<synchronous>, transform_indices = @transform_2, window_bounds = array<i64: 144, 16>}, {pipeline_mode = #tpu.pipeline_mode<synchronous>, transform_indices = @transform_3, window_bounds = array<i64: 1, 16>}, {transform_indices = @transform_4, window_bounds = array<i64: 1, 4, 8, 16>}]} {
    %c0 = arith.constant 0 : index
    %c0_0 = arith.constant 0 : index
    %c0_1 = arith.constant 0 : index
    %c0_2 = arith.constant 0 : index
    %0 = vector.load %arg2[%c0, %c0_0, %c0_1, %c0_2] : memref<1x4x8x64xbf16, #tpu.memory_space<vmem>>, vector<1x4x8x64xbf16>
    %1 = vector.shape_cast %0 : vector<1x4x8x64xbf16> to vector<4x8x64xbf16>
    %c0_3 = arith.constant 0 : index
    %c0_4 = arith.constant 0 : index
    %c0_5 = arith.constant 0 : index
    %c0_6 = arith.constant 0 : index
    %2 = vector.load %arg3[%c0_3, %c0_4, %c0_5, %c0_6] : memref<1x1x8x64xbf16, #tpu.memory_space<vmem>>, vector<1x1x8x64xbf16>
    %3 = vector.shape_cast %2 : vector<1x1x8x64xbf16> to vector<1x8x64xbf16>
    %c0_7 = arith.constant 0 : index
    %c0_8 = arith.constant 0 : index
    %c0_9 = arith.constant 0 : index
    %4 = vector.load %arg7[%c0_7, %c0_8, %c0_9] : memref<4x8x144xbf16, #tpu.memory_space<vmem>>, vector<4x8x64xbf16>
    tpu.vector_store %arg7[%c0_7, %c0_8, %c0_9], %1 {strides = array<i32>} : memref<4x8x144xbf16, #tpu.memory_space<vmem>>, vector<4x8x64xbf16>,
    %5 = vector.extract_strided_slice %3 {offsets = [0, 0, 32], sizes = [1, 8, 32], strides = [1, 1, 1]} : vector<1x8x64xbf16> to vector<1x8x32xbf16>
    %c0_10 = arith.constant 0 : index
    %c0_11 = arith.constant 0 : index
    %c64 = arith.constant 64 : index
    %6 = vector.load %arg7[%c0_10, %c0_11, %c64] : memref<4x8x144xbf16, #tpu.memory_space<vmem>>, vector<1x8x32xbf16>
    tpu.vector_store %arg7[%c0_10, %c0_11, %c64], %5 {strides = array<i32>} : memref<4x8x144xbf16, #tpu.memory_space<vmem>>, vector<1x8x32xbf16>,
    %7 = vector.extract_strided_slice %1 {offsets = [0, 0, 32], sizes = [3, 8, 32], strides = [1, 1, 1]} : vector<4x8x64xbf16> to vector<3x8x32xbf16>
    %c1 = arith.constant 1 : index
    %c0_12 = arith.constant 0 : index
    %c64_13 = arith.constant 64 : index
    %8 = vector.load %arg7[%c1, %c0_12, %c64_13] : memref<4x8x144xbf16, #tpu.memory_space<vmem>>, vector<3x8x32xbf16>
    tpu.vector_store %arg7[%c1, %c0_12, %c64_13], %7 {strides = array<i32>} : memref<4x8x144xbf16, #tpu.memory_space<vmem>>, vector<3x8x32xbf16>,
    %9 = vector.extract_strided_slice %1 {offsets = [0, 0, 16], sizes = [4, 1, 32], strides = [1, 1, 1]} : vector<4x8x64xbf16> to vector<4x1x32xbf16>
    %c0_14 = arith.constant 0 : index
    %c0_15 = arith.constant 0 : index
    %c96 = arith.constant 96 : index
    %10 = vector.load %arg7[%c0_14, %c0_15, %c96] : memref<4x8x144xbf16, #tpu.memory_space<vmem>>, vector<4x1x32xbf16>
    tpu.vector_store %arg7[%c0_14, %c0_15, %c96], %9 {strides = array<i32>} : memref<4x8x144xbf16, #tpu.memory_space<vmem>>, vector<4x1x32xbf16>,
    %11 = vector.extract_strided_slice %1 {offsets = [0, 0, 16], sizes = [4, 7, 32], strides = [1, 1, 1]} : vector<4x8x64xbf16> to vector<4x7x32xbf16>
    %c0_16 = arith.constant 0 : index
    %c1_17 = arith.constant 1 : index
    %c96_18 = arith.constant 96 : index
    %12 = vector.load %arg7[%c0_16, %c1_17, %c96_18] : memref<4x8x144xbf16, #tpu.memory_space<vmem>>, vector<4x7x32xbf16>
    tpu.vector_store %arg7[%c0_16, %c1_17, %c96_18], %11 {strides = array<i32>} : memref<4x8x144xbf16, #tpu.memory_space<vmem>>, vector<4x7x32xbf16>,
    %13 = vector.extract_strided_slice %3 {offsets = [0, 0, 32], sizes = [1, 1, 16], strides = [1, 1, 1]} : vector<1x8x64xbf16> to vector<1x1x16xbf16>
    %c0_19 = arith.constant 0 : index
    %c0_20 = arith.constant 0 : index
    %c128 = arith.constant 128 : index
    %14 = vector.load %arg7[%c0_19, %c0_20, %c128] : memref<4x8x144xbf16, #tpu.memory_space<vmem>>, vector<1x1x16xbf16>
    tpu.vector_store %arg7[%c0_19, %c0_20, %c128], %13 {strides = array<i32>} : memref<4x8x144xbf16, #tpu.memory_space<vmem>>, vector<1x1x16xbf16>,
    %15 = vector.extract_strided_slice %3 {offsets = [0, 0, 32], sizes = [1, 7, 16], strides = [1, 1, 1]} : vector<1x8x64xbf16> to vector<1x7x16xbf16>
    %c0_21 = arith.constant 0 : index
    %c1_22 = arith.constant 1 : index
    %c128_23 = arith.constant 128 : index
    %16 = vector.load %arg7[%c0_21, %c1_22, %c128_23] : memref<4x8x144xbf16, #tpu.memory_space<vmem>>, vector<1x7x16xbf16>
    tpu.vector_store %arg7[%c0_21, %c1_22, %c128_23], %15 {strides = array<i32>} : memref<4x8x144xbf16, #tpu.memory_space<vmem>>, vector<1x7x16xbf16>,
    %17 = vector.extract_strided_slice %1 {offsets = [0, 0, 32], sizes = [3, 1, 16], strides = [1, 1, 1]} : vector<4x8x64xbf16> to vector<3x1x16xbf16>
    %c1_24 = arith.constant 1 : index
    %c0_25 = arith.constant 0 : index
    %c128_26 = arith.constant 128 : index
    %18 = vector.load %arg7[%c1_24, %c0_25, %c128_26] : memref<4x8x144xbf16, #tpu.memory_space<vmem>>, vector<3x1x16xbf16>
    tpu.vector_store %arg7[%c1_24, %c0_25, %c128_26], %17 {strides = array<i32>} : memref<4x8x144xbf16, #tpu.memory_space<vmem>>, vector<3x1x16xbf16>,
    %19 = vector.extract_strided_slice %1 {offsets = [0, 0, 32], sizes = [3, 7, 16], strides = [1, 1, 1]} : vector<4x8x64xbf16> to vector<3x7x16xbf16>
    %c1_27 = arith.constant 1 : index
    %c1_28 = arith.constant 1 : index
    %c128_29 = arith.constant 128 : index
    %20 = vector.load %arg7[%c1_27, %c1_28, %c128_29] : memref<4x8x144xbf16, #tpu.memory_space<vmem>>, vector<3x7x16xbf16>
    tpu.vector_store %arg7[%c1_27, %c1_28, %c128_29], %19 {strides = array<i32>} : memref<4x8x144xbf16, #tpu.memory_space<vmem>>, vector<3x7x16xbf16>,
    %c0_30 = arith.constant 0 : index
    %c0_31 = arith.constant 0 : index
    %c0_32 = arith.constant 0 : index
    %21 = vector.load %arg7[%c0_30, %c0_31, %c0_32] : memref<4x8x144xbf16, #tpu.memory_space<vmem>>, vector<4x8x144xbf16>
    %22 = vector.shape_cast %21 : vector<4x8x144xbf16> to vector<32x144xbf16>
    %c0_33 = arith.constant 0 : index
    %c0_34 = arith.constant 0 : index
    %23 = vector.load %arg4[%c0_33, %c0_34] : memref<144x16xbf16, #tpu.memory_space<vmem>>, vector<144x16xbf16>
    %cst = arith.constant dense<0.000000e+00> : vector<32x16xf32>
    %24 = tpu.matmul %22, %23, %cst {dimension_numbers = #tpu.dot_dimension_numbers<[1], [0], [0], [1], [0, 0, 1, 1], [], []>} : vector<32x144xbf16>, vector<144x16xbf16>, vector<32x16xf32> -> vector<32x16xf32>
    %c0_35 = arith.constant 0 : index
    %c0_36 = arith.constant 0 : index
    %25 = vector.load %arg5[%c0_35, %c0_36] : memref<1x16xf32, #tpu.memory_space<vmem>>, vector<1x16xf32>
    %26 = vector.broadcast %25 : vector<1x16xf32> to vector<32x16xf32>
    %27 = arith.addf %24, %26 : vector<32x16xf32>
    %cst_37 = arith.constant 0.00999999977 : f32
    %28 = vector.broadcast %cst_37 : f32 to vector<32x16xf32>
    %29 = arith.mulf %28, %27 : vector<32x16xf32>
    %30 = arith.maximumf %27, %29 : vector<32x16xf32>
    %31 = vector.shape_cast %30 : vector<32x16xf32> to vector<4x8x16xf32>
    %32 = arith.truncf %31 : vector<4x8x16xf32> to vector<4x8x16xbf16>
    %c0_38 = arith.constant 0 : index
    %c0_39 = arith.constant 0 : index
    %c0_40 = arith.constant 0 : index
    %c0_41 = arith.constant 0 : index
    %33 = vector.load %arg6[%c0_38, %c0_39, %c0_40, %c0_41] : memref<1x4x8x16xbf16, #tpu.memory_space<vmem>>, vector<1x4x8x16xbf16>
    %34 = vector.shape_cast %33 : vector<1x4x8x16xbf16> to vector<4x8x16xbf16>
    %35 = vector.shape_cast %32 : vector<4x8x16xbf16> to vector<1x4x8x16xbf16>
    tpu.vector_store %arg6[%c0_38, %c0_39, %c0_40, %c0_41], %35 {strides = array<i32>} : memref<1x4x8x16xbf16, #tpu.memory_space<vmem>>, vector<1x4x8x16xbf16>,
    return
  }
  func.func @transform_0(%arg0: i32, %arg1: i32) -> (i32, i32, i32, i32) {
    %c0_i32 = arith.constant 0 : i32
    %c0_i32_0 = arith.constant 0 : i32
    %c0_i32_1 = arith.constant 0 : i32
    return %arg0, %arg1, %c0_i32, %c0_i32_0 : i32, i32, i32, i32
  }
  func.func @transform_1(%arg0: i32, %arg1: i32) -> (i32, i32, i32, i32) {
    %c4_i32 = arith.constant 4 : i32
    %0 = arith.muli %arg1, %c4_i32 : i32
    %c1_i32 = arith.constant 1 : i32
    %1 = arith.subi %0, %c1_i32 : i32
    %c0_i32 = arith.constant 0 : i32
    %2 = arith.maxsi %1, %c0_i32 : i32
    %c0_i32_0 = arith.constant 0 : i32
    %c0_i32_1 = arith.constant 0 : i32
    %c0_i32_2 = arith.constant 0 : i32
    return %arg0, %2, %c0_i32_0, %c0_i32_1 : i32, i32, i32, i32
  }
  func.func @transform_2(%arg0: i32, %arg1: i32) -> (i32, i32) {
    %c0_i32 = arith.constant 0 : i32
    %c0_i32_0 = arith.constant 0 : i32
    %c0_i32_1 = arith.constant 0 : i32
    return %c0_i32, %c0_i32_0 : i32, i32
  }
  func.func @transform_3(%arg0: i32, %arg1: i32) -> (i32, i32) {
    %c0_i32 = arith.constant 0 : i32
    %c0_i32_0 = arith.constant 0 : i32
    %c0_i32_1 = arith.constant 0 : i32
    return %c0_i32, %c0_i32_0 : i32, i32
  }
  func.func @transform_4(%arg0: i32, %arg1: i32) -> (i32, i32, i32, i32) {
    %c0_i32 = arith.constant 0 : i32
    %c0_i32_0 = arith.constant 0 : i32
    %c0_i32_1 = arith.constant 0 : i32
    return %arg0, %arg1, %c0_i32, %c0_i32_0 : i32, i32, i32, i32
  }
}

</mosaic_0001>

<llo_original>
// kernel: tpu_custom_call.1
$region0: #{tpu_custom_call.1}
  #allocation0 [shape = 'u32[]', space=smem, size = 0x4, offset = 0x4, fixed_abs, tag = 'smem constant byte address 0x4 - core index']
  #allocation1 [shape = 'u32[72,128]{1,0:T(1,128)}', space=vmem, size = 0x9000, scoped, tag = 'internal scratch']
  #allocation2 [shape = 'bf16[4,8,144]{2,1,0:T(8,128)(2,1)}', space=vmem, size = 0x4000, scoped, tag = 'scratch operand']
  %s0 = inlined_call_operand.vmem [shape: bf16[2,8,8,64], index: 0, kind: input, shape index: {}]
  %s1 = inlined_call_operand.hbm [shape: bf16[2,8,8,64], index: 1, kind: input, shape index: {}]
  %s2 = inlined_call_operand.vmem [shape: bf16[144,16], index: 2, kind: input, shape index: {}]
  %s3 = inlined_call_operand.vmem [shape: f32[1,16], index: 3, kind: input, shape index: {}]
  %s4 = inlined_call_operand.hbm [shape: bf16[2,8,8,16], index: 4, kind: output, shape index: {}]
  %s5 = sld [smem:[#allocation0]]
  $region53: #{tpu_custom_call.1} parent=0
    _
  %s7 = ssub.s32 1, %s5
  %s8 = scalar_select 0, %s7, %s5
  $region1: #{tpu_custom_call.1} parent=0
    #allocation3 [shape = 'u8[4096]{0}', space=vmem, size = 0x1000, scoped, tag = 'input window, operand 1']
    #allocation4 [shape = 's32[2]{0}', space=sflag, size = 0x8, scoped, tag = 'scoped memory for tpu_custom_call.1']
    #allocation5 [shape = 's32[2]{0}', space=sflag, size = 0x8, scoped, tag = 'scoped memory for tpu_custom_call.1']
    #allocation6 [shape = 'u8[16384]{0}', space=vmem, size = 0x4000, scoped, tag = 'output window, operand 0']
    %9 = vsyncpa [#allocation4], 0
    %s10 = scalar_lea.sflag [#allocation4], 1
    %11 = vsyncpa %s10, 0
    %12 = vsyncpa [#allocation5], 0
    %s13 = scalar_lea.sflag [#allocation5], 1
    %14 = vsyncpa %s13, 0
    loop: start=0, step=1, limit=6
    $region2: #{tpu_custom_call.1} parent=1 // loop_pre_header
      _
    $region3: #{tpu_custom_call.1} parent=1 // loop_header
      %s16 = sphi 0, %s20
      %p17 = scmp.ge.s32.totalorder %s16, 6
      %s23 = sphi 0, %s35
      %s24 = sphi 0, %s31
      %s25 = sphi 0, %s23
      %s26 = sphi 0, %s24
      %s27 = sphi 0, %s25
      %s28 = sphi 0, %s26
      %s40 = sphi 0, %s42
      %s43 = sphi 0, %s40
      %s44 = sphi 0, %s43
      %s60 = sphi 0, %s44
      %s76 = sphi 0, %s78
      %s79 = sphi 0, %s76
      %s80 = sphi 0, %s79
      %s96 = sphi 0, %s80
      %s100 = sphi 0, %s100
      %s102 = sphi 0, %s100
      %s103 = sphi 0, %s102
      %s117 = sphi 0, %s103
      %s121 = sphi 0, %s121
      %s123 = sphi 0, %s121
      %s124 = sphi 0, %s123
      %s138 = sphi 0, %s124
      %s146 = sphi 0, %s148
      %s149 = sphi 0, %s146
      %s150 = sphi 0, %s149
      %s166 = sphi 0, %s150
    $region4: #{tpu_custom_call.1} parent=1 // loop_header_branch
      %19 = sbr.rel (%p17) target = $region8
    $region5: #{tpu_custom_call.1} parent=1 // loop_body
      %s21 = ssub.s32 %s16, 1
      %s22 = ssub.s32 %s16, 2
      %s29 = sadd.s32 1, %s24
      %p30 = scmp.ge.s32.totalorder %s29, 2
      %s31 = scalar_select %p30, 0, %s29
      %s32 = sadd.s32 1, %s23
      %s33 = scalar_select %p30, %s32, %s23
      %p34 = scmp.ge.s32.totalorder %s33, 2
      %s35 = scalar_select %p34, 0, %s33
      %s36 = ssub.s32 %s23, %s35
      %s37 = ssub.s32 %s24, %s31
      %s38 = sor.u32 %s36, %s37
      %p39 = scmp.eq.s32.totalorder %s38, 0
      %s41 = sadd.s32 %s40, 1
      %s42 = scalar_select %p39, %s40, %s41
      %p45 = pneg %p39
      %p46 = scmp.eq.s32.totalorder %s16, 3
      %p47 = por %p45, %p46
      %p48 = scmp.ne.s32.totalorder %s40, %s43
      %p49 = scmp.eq.s32.totalorder %s16, 0
      %p50 = por %p48, %p49
      %p51 = scmp.ne.s32.totalorder %s40, %s43
      %p52 = scmp.eq.s32.totalorder %s21, 3
      %p53 = por %p51, %p52
      %p54 = scmp.ne.s32.totalorder %s43, %s44
      %p55 = scmp.eq.s32.totalorder %s21, 0
      %p56 = por %p54, %p55
      %p57 = scmp.ne.s32.totalorder %s43, %s44
      %p58 = scmp.eq.s32.totalorder %s22, 3
      %p59 = por %p57, %p58
      %p61 = scmp.ne.s32.totalorder %s44, %s60
      %p62 = scmp.eq.s32.totalorder %s22, 0
      %p63 = por %p61, %p62
      %s64 = smul.u32 %s24, 4
      %s65 = ssub.s32 %s64, 1
      %p66 = scmp.gt.s32.totalorder %s65, 0
      %s67 = scalar_select %p66, %s65, 0
      %s68 = smul.u32 %s31, 4
      %s69 = ssub.s32 %s68, 1
      %p70 = scmp.gt.s32.totalorder %s69, 0
      %s71 = scalar_select %p70, %s69, 0
      %s72 = ssub.s32 %s23, %s35
      %s73 = ssub.s32 %s67, %s71
      %s74 = sor.u32 %s72, %s73
      %p75 = scmp.eq.s32.totalorder %s74, 0
      %s77 = sadd.s32 %s76, 1
      %s78 = scalar_select %p75, %s76, %s77
      %p81 = pneg %p75
      %p82 = scmp.eq.s32.totalorder %s16, 3
      %p83 = por %p81, %p82
      %p84 = scmp.ne.s32.totalorder %s76, %s79
      %p85 = scmp.eq.s32.totalorder %s16, 0
      %p86 = por %p84, %p85
      %p87 = scmp.ne.s32.totalorder %s76, %s79
      %p88 = scmp.eq.s32.totalorder %s21, 3
      %p89 = por %p87, %p88
      %p90 = scmp.ne.s32.totalorder %s79, %s80
      %p91 = scmp.eq.s32.totalorder %s21, 0
      %p92 = por %p90, %p91
      %p93 = scmp.ne.s32.totalorder %s79, %s80
      %p94 = scmp.eq.s32.totalorder %s22, 3
      %p95 = por %p93, %p94
      %p97 = scmp.ne.s32.totalorder %s80, %s96
      %p98 = scmp.eq.s32.totalorder %s22, 0
      %p99 = por %p97, %p98
      %s101 = sadd.s32 %s100, 1
      %p104 = scmp.eq.s32.totalorder %s16, 3
      %p105 = scmp.ne.s32.totalorder %s100, %s102
      %p106 = scmp.eq.s32.totalorder %s16, 0
      %p107 = por %p105, %p106
      %p108 = scmp.ne.s32.totalorder %s100, %s102
      %p109 = scmp.eq.s32.totalorder %s21, 3
      %p110 = por %p108, %p109
      %p111 = scmp.ne.s32.totalorder %s102, %s103
      %p112 = scmp.eq.s32.totalorder %s21, 0
      %p113 = por %p111, %p112
      %p114 = scmp.ne.s32.totalorder %s102, %s103
      %p115 = scmp.eq.s32.totalorder %s22, 3
      %p116 = por %p114, %p115
      %p118 = scmp.ne.s32.totalorder %s103, %s117
      %p119 = scmp.eq.s32.totalorder %s22, 0
      %p120 = por %p118, %p119
      %s122 = sadd.s32 %s121, 1
      %p125 = scmp.eq.s32.totalorder %s16, 3
      %p126 = scmp.ne.s32.totalorder %s121, %s123
      %p127 = scmp.eq.s32.totalorder %s16, 0
      %p128 = por %p126, %p127
      %p129 = scmp.ne.s32.totalorder %s121, %s123
      %p130 = scmp.eq.s32.totalorder %s21, 3
      %p131 = por %p129, %p130
      %p132 = scmp.ne.s32.totalorder %s123, %s124
      %p133 = scmp.eq.s32.totalorder %s21, 0
      %p134 = por %p132, %p133
      %p135 = scmp.ne.s32.totalorder %s123, %s124
      %p136 = scmp.eq.s32.totalorder %s22, 3
      %p137 = por %p135, %p136
      %p139 = scmp.ne.s32.totalorder %s124, %s138
      %p140 = scmp.eq.s32.totalorder %s22, 0
      %p141 = por %p139, %p140
      %s142 = ssub.s32 %s23, %s35
      %s143 = ssub.s32 %s24, %s31
      %s144 = sor.u32 %s142, %s143
      %p145 = scmp.eq.s32.totalorder %s144, 0
      %s147 = sadd.s32 %s146, 1
      %s148 = scalar_select %p145, %s146, %s147
      %p151 = pneg %p145
      %p152 = scmp.eq.s32.totalorder %s16, 3
      %p153 = por %p151, %p152
      %p154 = scmp.ne.s32.totalorder %s146, %s149
      %p155 = scmp.eq.s32.totalorder %s16, 0
      %p156 = por %p154, %p155
      %p157 = scmp.ne.s32.totalorder %s146, %s149
      %p158 = scmp.eq.s32.totalorder %s21, 3
      %p159 = por %p157, %p158
      %p160 = scmp.ne.s32.totalorder %s149, %s150
      %p161 = scmp.eq.s32.totalorder %s21, 0
      %p162 = por %p160, %p161
      %p163 = scmp.ne.s32.totalorder %s149, %s150
      %p164 = scmp.eq.s32.totalorder %s22, 3
      %p165 = por %p163, %p164
      %p167 = scmp.ne.s32.totalorder %s150, %s166
      %p168 = scmp.eq.s32.totalorder %s22, 0
      %p169 = por %p167, %p168
      %p170 = scmp.le.s32.totalorder 1, %s16
      %p171 = scmp.lt.s32.totalorder %s16, 5
      %p172 = pnand %p170, %p171
      %p173 = pneg %p172
      // Predicated region
      $region9: #{tpu_custom_call.1} parent=5 // pred_check
        _
      $region10: #{tpu_custom_call.1} parent=5 // pred_check_branch
        %175 = sbr.rel (%p172) target = $region12
      $region11: #{tpu_custom_call.1} parent=5 // pred_region
        %s176 = ssub.s32 %s16, 1
        // Predicated region
        $region13: #{tpu_custom_call.1} parent=11 // pred_check
          %p177 = pneg %p113
        $region14: #{tpu_custom_call.1} parent=11 // pred_check_branch
          %179 = sbr.rel (%p177) target = $region16
        $region15: #{tpu_custom_call.1} parent=11 // pred_region
          _
        $region16: #{tpu_custom_call.1} parent=11 // pred_fallthru
          _
        // Predicated region
        $region17: #{tpu_custom_call.1} parent=11 // pred_check
          %p180 = pneg %p134
        $region18: #{tpu_custom_call.1} parent=11 // pred_check_branch
          %182 = sbr.rel (%p180) target = $region20
        $region19: #{tpu_custom_call.1} parent=11 // pred_region
          _
        $region20: #{tpu_custom_call.1} parent=11 // pred_fallthru
          _
      $region12: #{tpu_custom_call.1} parent=5 // pred_fallthru
        _
      %p183 = scmp.lt.s32.totalorder %s16, 4
      // Predicated region
      $region21: #{tpu_custom_call.1} parent=5 // pred_check
        %p184 = pneg %p183
      $region22: #{tpu_custom_call.1} parent=5 // pred_check_branch
        %186 = sbr.rel (%p184) target = $region24
      $region23: #{tpu_custom_call.1} parent=5 // pred_region
        // Predicated region
        $region25: #{tpu_custom_call.1} parent=23 // pred_check
          %p187 = pneg %p50
        $region26: #{tpu_custom_call.1} parent=23 // pred_check_branch
          %189 = sbr.rel (%p187) target = $region28
        $region27: #{tpu_custom_call.1} parent=23 // pred_region
          %s190 = smul.u32 4, %s24
          %p191 = scmp.lt.s32.totalorder %s23, 1
          %s192 = scalar_select %p191, %s23, 1
          %p193 = scmp.lt.s32.totalorder %s190, 7
          %s194 = scalar_select %p193, %s190, 7
          %s195 = smul.addr %s192, 8
          %s196 = sadd.s32 %s194, %s195
          %s197 = smul.addr %s196, 4
          %s198 = scalar_lea.vmem %s0, %s197
          %s199 = smul.u32 4, %s24
        $region28: #{tpu_custom_call.1} parent=23 // pred_fallthru
          _
        // Predicated region
        $region29: #{tpu_custom_call.1} parent=23 // pred_check
          %p200 = pneg %p86
        $region30: #{tpu_custom_call.1} parent=23 // pred_check_branch
          %202 = sbr.rel (%p200) target = $region32
        $region31: #{tpu_custom_call.1} parent=23 // pred_region
          %s203 = sand.u32 %s76, 1
          %s204 = scalar_lea.sflag [#allocation4], %s203
          %s205 = sand.u32 %s76, 1
          %s206 = smul.addr %s205, 4
          %s207 = scalar_lea.vmem [#allocation3], %s206
          %s208 = smul.u32 %s24, 4
          %s209 = ssub.s32 %s208, 1
          %p210 = scmp.gt.s32.totalorder %s209, 0
          %s211 = scalar_select %p210, %s209, 0
          %213 = vsyncadd %s204, 0
          %s214 = smul.addr %s23, 8
          %s215 = sadd.s32 %s211, %s214
          %s216 = smul.addr %s215, 4
          %s217 = scalar_lea.hbm %s1, %s216
          %s219 = sshll.u32 %s217, 4
          %s220 = int_to_ptr.hbm [resolvable:$true] %s219
          %s221 = sshll.u32 %s207, 4
          %s222 = int_to_ptr.vmem [resolvable:$true] %s221
          %224 = dma.hbm_to_vmem [thread:$0]  %s220, 64, %s222, %s204
        $region32: #{tpu_custom_call.1} parent=23 // pred_fallthru
          _
      $region24: #{tpu_custom_call.1} parent=5 // pred_fallthru
        _
      %p225 = scmp.le.s32.totalorder 1, %s16
      %p226 = scmp.lt.s32.totalorder %s16, 5
      %p227 = pnand %p225, %p226
      %p228 = pneg %p227
      // Predicated region
      $region33: #{tpu_custom_call.1} parent=5 // pred_check
        _
      $region34: #{tpu_custom_call.1} parent=5 // pred_check_branch
        %230 = sbr.rel (%p227) target = $region36
      $region35: #{tpu_custom_call.1} parent=5 // pred_region
        %s231 = ssub.s32 %s16, 1
        %s232 = sand.u32 %s79, 1
        %s233 = scalar_lea.sflag [#allocation4], %s232
        %s234 = sand.u32 %s79, 1
        %s235 = smul.addr %s234, 4
        %s236 = scalar_lea.vmem [#allocation3], %s235
        // Predicated region
        $region37: #{tpu_custom_call.1} parent=35 // pred_check
          %p237 = pneg %p92
        $region38: #{tpu_custom_call.1} parent=35 // pred_check_branch
          %239 = sbr.rel (%p237) target = $region40
        $region39: #{tpu_custom_call.1} parent=35 // pred_region
          %241 = dma.done %s233, 64
        $region40: #{tpu_custom_call.1} parent=35 // pred_fallthru
          _
        %s242 = smul.u32 4, %s26
        %p243 = scmp.lt.s32.totalorder %s25, 1
        %s244 = scalar_select %p243, %s25, 1
        %p245 = scmp.lt.s32.totalorder %s242, 7
        %s246 = scalar_select %p245, %s242, 7
        %s247 = smul.addr %s244, 8
        %s248 = sadd.s32 %s246, %s247
        %s249 = smul.addr %s248, 4
        %s250 = scalar_lea.vmem %s0, %s249
        %p251 = pneg %p56
        %p252 = pneg %p53
        %s253 = sand.u32 %s79, 1
        %s254 = scalar_lea.sflag [#allocation4], %s253
        %s255 = sand.u32 %s79, 1
        %s256 = smul.addr %s255, 4
        %s257 = scalar_lea.vmem [#allocation3], %s256
        %p258 = pneg %p92
        %p259 = pneg %p89
        %p260 = pneg %p113
        %p261 = pneg %p110
        %p262 = pneg %p134
        %p263 = pneg %p131
        %p264 = pneg %p162
        %p265 = pneg %p159
        %s266 = sand.u32 %s149, 1
        %s267 = scalar_lea.sflag [#allocation5], %s266
        %s268 = sand.u32 %s149, 1
        %s269 = smul.addr %s268, 16
        %s270 = scalar_lea.vmem [#allocation6], %s269
        %s271 = smul.u32 4, %s26
        %p272 = scmp.lt.s32.totalorder %s25, 1
        %s273 = scalar_select %p272, %s25, 1
        %p274 = scmp.lt.s32.totalorder %s271, 7
        %s275 = scalar_select %p274, %s271, 7
        %s276 = smul.addr %s273, 8
        %s277 = sadd.s32 %s275, %s276
        %s278 = smul.addr %s277, 4
        %s279 = scalar_lea.vmem %s0, %s278
        %s280 = smul.u32 4, %s26
        %s281 = smul.u32 %s26, 4
        %s282 = ssub.s32 %s281, 1
        %p283 = scmp.gt.s32.totalorder %s282, 0
        %s284 = scalar_select %p283, %s282, 0
        %s285 = smul.u32 4, %s26
        %v287 = vld [vmem:[%s279] sm:$0xf]
        %v288 = vld [vmem:[%s279 + $0x4] sm:$0xf]
        %v289 = vld [vmem:[%s279 + $0x8] sm:$0xf]
        %v290 = vld [vmem:[%s279 + $0xc] sm:$0xf]
        %v291 = vld [vmem:[%s236] sm:$0xf]
        %vm292 = vcmask 519168
        %293 = vst.msk [vmem:[#allocation2] sm:$0xf] %vm292, %v287
        %294 = vst.msk [vmem:[#allocation2 + $0x8] sm:$0xf] %vm292, %v288
        %295 = vst.msk [vmem:[#allocation2 + $0x10] sm:$0xf] %vm292, %v289
        %296 = vst.msk [vmem:[#allocation2 + $0x18] sm:$0xf] %vm292, %v290
        %298 = vrot.lane.b32.xlu0 %v291, 32
        %v299 = vpop.permute.xlu0 %298
        %vm301 = vcmask 781824
        %302 = vst.msk [vmem:[#allocation2] sm:$0xf] %vm301, %v299
        %306 = vrot.lane.b32.xlu0 %v287, 32
        %v307 = vpop.permute.xlu0 %306
        %308 = vrot.lane.b32.xlu0 %v288, 32
        %v309 = vpop.permute.xlu0 %308
        %310 = vrot.lane.b32.xlu0 %v289, 32
        %v311 = vpop.permute.xlu0 %310
        %s315 = scalar_lea.vmem [#allocation2], 8
        %316 = vst.msk [vmem:[%s315] sm:$0xf] %vm301, %v307
        %317 = vst.msk [vmem:[%s315 + $0x8] sm:$0xf] %vm301, %v309
        %318 = vst.msk [vmem:[%s315 + $0x10] sm:$0xf] %vm301, %v311
        %320 = vrot.lane.b32.xlu0 %v287, 80
        %v321 = vpop.permute.xlu0 %320
        %322 = vrot.lane.b32.xlu0 %v288, 80
        %v323 = vpop.permute.xlu0 %322
        %324 = vrot.lane.b32.xlu0 %v289, 80
        %v325 = vpop.permute.xlu0 %324
        %326 = vrot.lane.b32.xlu0 %v290, 80
        %v327 = vpop.permute.xlu0 %326
        %vm332 = vcmask 1041152
        %vm333 = vsmask.f32 256
        %vm334 = vmand %vm332, %vm333
        %v335 = vld [vmem:[#allocation2] sm:$0x1]
        %v336 = vsel %vm334, %v321, %v335
        %337 = vst [vmem:[#allocation2] sm:$0x1] %v336
        %v338 = vld [vmem:[#allocation2 + $0x8] sm:$0x1]
        %v339 = vsel %vm334, %v323, %v338
        %340 = vst [vmem:[#allocation2 + $0x8] sm:$0x1] %v339
        %v341 = vld [vmem:[#allocation2 + $0x10] sm:$0x1]
        %v342 = vsel %vm334, %v325, %v341
        %343 = vst [vmem:[#allocation2 + $0x10] sm:$0x1] %v342
        %v344 = vld [vmem:[#allocation2 + $0x18] sm:$0x1]
        %v345 = vsel %vm334, %v327, %v344
        %346 = vst [vmem:[#allocation2 + $0x18] sm:$0x1] %v345
        %v348 = vshrl.u32 %v287, 16
        %v350 = vrot.slane %v348, 7
        %v351 = vshll.u32 %v287, 16
        %v353 = vor.u32 %v350, %v351
        %v355 = vshrl.u32 %v288, 16
        %v357 = vrot.slane %v355, 7
        %v358 = vshll.u32 %v288, 16
        %v360 = vor.u32 %v357, %v358
        %v362 = vshrl.u32 %v289, 16
        %v364 = vrot.slane %v362, 7
        %v365 = vshll.u32 %v289, 16
        %v367 = vor.u32 %v364, %v365
        %v369 = vshrl.u32 %v290, 16
        %v371 = vrot.slane %v369, 7
        %v372 = vshll.u32 %v290, 16
        %v374 = vor.u32 %v371, %v372
        %375 = vrot.lane.b32.xlu0 %v353, 80
        %v376 = vpop.permute.xlu0 %375
        %377 = vrot.lane.b32.xlu0 %v360, 80
        %v378 = vpop.permute.xlu0 %377
        %379 = vrot.lane.b32.xlu0 %v367, 80
        %v380 = vpop.permute.xlu0 %379
        %381 = vrot.lane.b32.xlu0 %v374, 80
        %v382 = vpop.permute.xlu0 %381
        %vm387 = vcmask 1044224
        %vm388 = vsmask.f32 7938
        %vm389 = vmand %vm387, %vm388
        %v390 = vld [vmem:[#allocation2] sm:$0xf]
        %v391 = vsel %vm389, %v376, %v390
        %392 = vst [vmem:[#allocation2] sm:$0xf] %v391
        %v393 = vld [vmem:[#allocation2 + $0x8] sm:$0xf]
        %v394 = vsel %vm389, %v378, %v393
        %395 = vst [vmem:[#allocation2 + $0x8] sm:$0xf] %v394
        %v396 = vld [vmem:[#allocation2 + $0x10] sm:$0xf]
        %v397 = vsel %vm389, %v380, %v396
        %398 = vst [vmem:[#allocation2 + $0x10] sm:$0xf] %v397
        %v399 = vld [vmem:[#allocation2 + $0x18] sm:$0xf]
        %v400 = vsel %vm389, %v382, %v399
        %401 = vst [vmem:[#allocation2 + $0x18] sm:$0xf] %v400
        %402 = vrot.lane.b32.xlu0 %v291, 96
        %v403 = vpop.permute.xlu0 %402
        %vm405 = vcmask 122880
        %vm406 = vmand %vm405, %vm333
        %v407 = vld [vmem:[#allocation2 + $0x4] sm:$0x1]
        %v408 = vsel %vm406, %v403, %v407
        %409 = vst [vmem:[#allocation2 + $0x4] sm:$0x1] %v408
        %v411 = vshrl.u32 %v291, 16
        %v413 = vrot.slane %v411, 7
        %v414 = vshll.u32 %v291, 16
        %v416 = vor.u32 %v413, %v414
        %417 = vrot.lane.b32.xlu0 %v416, 96
        %v418 = vpop.permute.xlu0 %417
        %vm420 = vcmask 125952
        %vm421 = vmand %vm420, %vm388
        %v422 = vld [vmem:[#allocation2 + $0x4] sm:$0xf]
        %v423 = vsel %vm421, %v418, %v422
        %424 = vst [vmem:[#allocation2 + $0x4] sm:$0xf] %v423
        %425 = vrot.lane.b32.xlu0 %v287, 96
        %v426 = vpop.permute.xlu0 %425
        %427 = vrot.lane.b32.xlu0 %v288, 96
        %v428 = vpop.permute.xlu0 %427
        %429 = vrot.lane.b32.xlu0 %v289, 96
        %v430 = vpop.permute.xlu0 %429
        %v434 = vld [vmem:[%s315 + $0x4] sm:$0x1]
        %v435 = vsel %vm406, %v426, %v434
        %436 = vst [vmem:[%s315 + $0x4] sm:$0x1] %v435
        %v437 = vld [vmem:[%s315 + $0xc] sm:$0x1]
        %v438 = vsel %vm406, %v428, %v437
        %439 = vst [vmem:[%s315 + $0xc] sm:$0x1] %v438
        %v440 = vld [vmem:[%s315 + $0x14] sm:$0x1]
        %v441 = vsel %vm406, %v430, %v440
        %442 = vst [vmem:[%s315 + $0x14] sm:$0x1] %v441
        %443 = vrot.lane.b32.xlu0 %v353, 96
        %v444 = vpop.permute.xlu0 %443
        %445 = vrot.lane.b32.xlu0 %v360, 96
        %v446 = vpop.permute.xlu0 %445
        %447 = vrot.lane.b32.xlu0 %v367, 96
        %v448 = vpop.permute.xlu0 %447
        %v452 = vld [vmem:[%s315 + $0x4] sm:$0xf]
        %v453 = vsel %vm421, %v444, %v452
        %454 = vst [vmem:[%s315 + $0x4] sm:$0xf] %v453
        %v455 = vld [vmem:[%s315 + $0xc] sm:$0xf]
        %v456 = vsel %vm421, %v446, %v455
        %457 = vst [vmem:[%s315 + $0xc] sm:$0xf] %v456
        %v458 = vld [vmem:[%s315 + $0x14] sm:$0xf]
        %v459 = vsel %vm421, %v448, %v458
        %460 = vst [vmem:[%s315 + $0x14] sm:$0xf] %v459
        %v461 = vld [vmem:[#allocation2] sm:$0xff]
        %v462 = vld [vmem:[#allocation2 + $0x8] sm:$0xff]
        %v463 = vld [vmem:[#allocation2 + $0x10] sm:$0xff]
        %v464 = vld [vmem:[#allocation2 + $0x18] sm:$0xff]
        %v465 = vld [vmem:[%s2] sm:$0xf]
        %v466 = vld [vmem:[%s2 + $0x4] sm:$0xf]
        %v467 = vld [vmem:[%s2 + $0x8] sm:$0xf]
        %v468 = vld [vmem:[%s2 + $0xc] sm:$0xf]
        %v469 = vld [vmem:[%s2 + $0x10] sm:$0xf]
        %v470 = vld [vmem:[%s2 + $0x14] sm:$0xf]
        %v471 = vld [vmem:[%s2 + $0x18] sm:$0xf]
        %v472 = vld [vmem:[%s2 + $0x1c] sm:$0xf]
        %v473 = vld [vmem:[%s2 + $0x20] sm:$0xf]
        %v474 = vld [vmem:[%s2 + $0x24] sm:$0xf]
        %v475 = vld [vmem:[%s2 + $0x28] sm:$0xf]
        %v476 = vld [vmem:[%s2 + $0x2c] sm:$0xf]
        %v477 = vld [vmem:[%s2 + $0x30] sm:$0xf]
        %v478 = vld [vmem:[%s2 + $0x34] sm:$0xf]
        %v479 = vld [vmem:[%s2 + $0x38] sm:$0xf]
        %v480 = vld [vmem:[%s2 + $0x3c] sm:$0xf]
        %v481 = vld [vmem:[%s2 + $0x40] sm:$0xf]
        %v482 = vld [vmem:[%s2 + $0x44] sm:$0xf]
        %v483 = vld [vmem:[%s3] sm:$0x1]
        %v485 = vperm.slane %v483, 0
        %v491 = vunpack.c.l.b16 %v461
        %v492 = vunpack.c.h.b16 %v461
        %v493 = vunpack.c.l.b16 %v462
        %v494 = vunpack.c.h.b16 %v462
        %v495 = vunpack.c.l.b16 %v463
        %v496 = vunpack.c.h.b16 %v463
        %v497 = vunpack.c.l.b16 %v464
        %v498 = vunpack.c.h.b16 %v464
        %v499 = vpack.c.b16 %v493, %v491
        %v500 = vpack.c.b16 %v494, %v492
        %v501 = vpack.c.b16 %v497, %v495
        %v502 = vpack.c.b16 %v498, %v496
        %v523 = vunpack.c.l.b16 %v465
        %v524 = vunpack.c.l.b16 %v466
        %v525 = vunpack.c.l.b16 %v467
        %v526 = vunpack.c.l.b16 %v468
        %v527 = vunpack.c.l.b16 %v469
        %v528 = vunpack.c.l.b16 %v470
        %v529 = vunpack.c.l.b16 %v471
        %v530 = vunpack.c.l.b16 %v472
        %v531 = vunpack.c.l.b16 %v473
        %v532 = vunpack.c.l.b16 %v474
        %v533 = vunpack.c.l.b16 %v475
        %v534 = vunpack.c.l.b16 %v476
        %v535 = vunpack.c.l.b16 %v477
        %v536 = vunpack.c.l.b16 %v478
        %v537 = vunpack.c.l.b16 %v479
        %v538 = vunpack.c.l.b16 %v480
        %v539 = vunpack.c.l.b16 %v481
        %v540 = vunpack.c.l.b16 %v482
        %v541 = vpack.c.b16 %v524, %v523
        %v542 = vpack.c.b16 %v526, %v525
        %v543 = vpack.c.b16 %v528, %v527
        %v544 = vpack.c.b16 %v530, %v529
        %v545 = vpack.c.b16 %v532, %v531
        %v546 = vpack.c.b16 %v534, %v533
        %v547 = vpack.c.b16 %v536, %v535
        %v548 = vpack.c.b16 %v538, %v537
        %v549 = vpack.c.b16 %v540, %v539
        %vm559 = vcmask 130048
        %v561 = vsel %vm559, %v500, 0
        %v564 = vsel %vm559, %v502, 0
        %566 = vmatpush.bf16.msra.mxu0 %v548
        %567 = vmatpush.bf16.msra.mxu0 %v547
        %568 = vmatpush.bf16.msra.mxu0 %v546
        %569 = vmatpush.bf16.msra.mxu0 %v545
        %570 = vmatpush.bf16.msra.mxu0 %v544
        %571 = vmatpush.bf16.msra.mxu0 %v543
        %572 = vmatpush.bf16.msra.mxu0 %v542
        %573 = vmatpush.bf16.msra.mxu0 %v541
        %574 = vmatmul.bf16.gmra.mxu0 %v499
        %v575 = vpop.f32.mrf.mxu0
        %v576 = vadd.f32 %v485, %v575
        %v577 = vpop.f32.mrf.mxu0
        %v578 = vadd.f32 %v485, %v577
        %579 = vmatmul.bf16.gmra.mxu0 %v501
        %v580 = vpop.f32.mrf.mxu0
        %v581 = vadd.f32 %v485, %v580
        %v582 = vpop.f32.mrf.mxu0
        %v583 = vadd.f32 %v485, %v582
        %584 = vdwg.mxu0
        %585 = vmatpush.bf16.msra.mxu0 0
        %586 = vmatpush.bf16.msra.mxu0 0
        %587 = vmatpush.bf16.msra.mxu0 0
        %588 = vmatpush.bf16.msra.mxu0 0
        %589 = vmatpush.bf16.msra.mxu0 0
        %590 = vmatpush.bf16.msra.mxu0 0
        %591 = vmatpush.bf16.msra.mxu0 0
        %592 = vmatpush.bf16.msra.mxu0 %v549
        %593 = vmatmul.bf16.gmra.mxu0 %v561
        %v594 = vpop.f32.mrf.mxu0
        %v595 = vadd.f32 %v576, %v594
        %v596 = vpop.f32.mrf.mxu0
        %v597 = vadd.f32 %v578, %v596
        %598 = vmatmul.bf16.gmra.mxu0 %v564
        %v599 = vpop.f32.mrf.mxu0
        %v600 = vadd.f32 %v581, %v599
        %v601 = vpop.f32.mrf.mxu0
        %v602 = vadd.f32 %v583, %v601
        %603 = vdwg.mxu0
        %v604 = vmul.f32 %v595, 0.01
        %v605 = vmul.f32 %v597, 0.01
        %v606 = vmul.f32 %v600, 0.01
        %v607 = vmul.f32 %v602, 0.01
        %v608 = vmax.f32 %v595, %v604
        %v609 = vmax.f32 %v597, %v605
        %v610 = vmax.f32 %v600, %v606
        %v611 = vmax.f32 %v602, %v607
        %v612 = vpack.c.bf16 %v608, %v608
        %v613 = vpack.c.bf16 %v609, %v609
        %v614 = vpack.c.bf16 %v610, %v610
        %v615 = vpack.c.bf16 %v611, %v611
        %vm616 = vcmask 125952
        %617 = vst.msk [vmem:[%s270] sm:$0xf] %vm616, %v612
        %618 = vst.msk [vmem:[%s270 + $0x4] sm:$0xf] %vm616, %v613
        %619 = vst.msk [vmem:[%s270 + $0x8] sm:$0xf] %vm616, %v614
        %620 = vst.msk [vmem:[%s270 + $0xc] sm:$0xf] %vm616, %v615
        %s621 = sand.u32 %s149, 1
        %s622 = scalar_lea.sflag [#allocation5], %s621
        %s623 = sand.u32 %s149, 1
        %s624 = smul.addr %s623, 16
        %s625 = scalar_lea.vmem [#allocation6], %s624
        // Predicated region
        $region41: #{tpu_custom_call.1} parent=35 // pred_check
          %p626 = pneg %p159
        $region42: #{tpu_custom_call.1} parent=35 // pred_check_branch
          %628 = sbr.rel (%p626) target = $region44
        $region43: #{tpu_custom_call.1} parent=35 // pred_region
          %s629 = smul.u32 4, %s26
          %631 = vsyncadd %s622, 0
          %s632 = smul.addr %s25, 8
          %s633 = sadd.s32 %s629, %s632
          %s634 = smul.addr %s633, 4
          %s635 = scalar_lea.hbm %s4, %s634
          %s636 = sshll.u32 %s625, 4
          %s637 = int_to_ptr.vmem [resolvable:$true] %s636
          %s638 = sshll.u32 %s635, 4
          %s639 = int_to_ptr.hbm [resolvable:$true] %s638
          %644 = dma.vmem_to_hbm [thread:$0]  %s637, 256, %s639, %s622, 64, 64, 4
        $region44: #{tpu_custom_call.1} parent=35 // pred_fallthru
          _
      $region36: #{tpu_custom_call.1} parent=5 // pred_fallthru
        _
      %p645 = scmp.le.s32.totalorder 2, %s16
      // Predicated region
      $region45: #{tpu_custom_call.1} parent=5 // pred_check
        %p646 = pneg %p645
      $region46: #{tpu_custom_call.1} parent=5 // pred_check_branch
        %648 = sbr.rel (%p646) target = $region48
      $region47: #{tpu_custom_call.1} parent=5 // pred_region
        %s649 = ssub.s32 %s16, 2
        // Predicated region
        $region49: #{tpu_custom_call.1} parent=47 // pred_check
          %p650 = pneg %p165
        $region50: #{tpu_custom_call.1} parent=47 // pred_check_branch
          %652 = sbr.rel (%p650) target = $region52
        $region51: #{tpu_custom_call.1} parent=47 // pred_region
          %s653 = sand.u32 %s150, 1
          %s654 = scalar_lea.sflag [#allocation5], %s653
          %s655 = sand.u32 %s150, 1
          %s656 = smul.addr %s655, 16
          %s657 = scalar_lea.vmem [#allocation6], %s656
          %659 = dma.done %s654, 256
        $region52: #{tpu_custom_call.1} parent=47 // pred_fallthru
          _
      $region48: #{tpu_custom_call.1} parent=5 // pred_fallthru
        _
    $region6: #{tpu_custom_call.1} parent=1 // loop_footer
      %s20 = sadd.s32 1, %s16
    $region7: #{tpu_custom_call.1} parent=1 // loop_footer_branch
      %15 = sbr.rel target = $region3
    $region8: #{tpu_custom_call.1} parent=1 // loop_exit
      _
    %660 = vsyncpa [#allocation4], 1
    %s661 = scalar_lea.sflag [#allocation4], 1
    %662 = vsyncpa %s661, 1
    %663 = vsyncpa [#allocation5], 1
    %s664 = scalar_lea.sflag [#allocation5], 1
    %665 = vsyncpa %s664, 1

</llo_original>
